<compile_context>
chip_gen: v6e
topology: v6e:2x2x1
jax: 0.10.0
libtpu: 0.0.40
codegen_flags: <defaults>
</compile_context>

<pallas_src>
import functools

import numpy as np
import jax
import jax.numpy as jnp
from jax.experimental import pallas as pl
from jax.experimental.pallas import tpu as pltpu

LANE = 128


def _round_up(n, m):
    return ((n + m - 1) // m) * m


# ----------------------------------------------------------------------------
# Pallas kernel: fused readout MLP + softmax (lane-dense, 128-wide tiles).
# Padded output lanes are pre-masked via b2 (= -1e30), so no in-kernel select.
# ----------------------------------------------------------------------------
def _readout_kernel(x_ref, w1_ref, b1_ref, w2_ref, b2_ref, o_ref):
    x = x_ref[...]                                                # (TB, 128) f32

    h = jnp.dot(x, w1_ref[...], preferred_element_type=jnp.float32) + b1_ref[...]
    h = jnp.maximum(h, 0.0)                                       # ReLU

    logits = jnp.dot(h, w2_ref[...], preferred_element_type=jnp.float32) + b2_ref[...]

    # Numerically-stable softmax; padded lanes carry -1e30 -> exp underflows to 0.
    m = jnp.max(logits, axis=-1, keepdims=True)
    e = jnp.exp(logits - m)
    s = jnp.sum(e, axis=-1, keepdims=True)
    o_ref[...] = (e / s).astype(o_ref.dtype)                      # exact divide


@functools.lru_cache(maxsize=1)
def _weights_can_single_buffer():
    """Probe whether pl.Buffered(1) (single-buffered constant operand) lowers
    and runs on this JAX/libtpu; if not, fall back to default double-buffering."""
    try:
        wspec = pl.BlockSpec((8, 128), lambda i: (0, 0), pipeline_mode=pl.Buffered(1))

        def k(x_ref, w_ref, o_ref):
            o_ref[...] = x_ref[...] + w_ref[...]

        f = pl.pallas_call(
            k,
            out_shape=jax.ShapeDtypeStruct((16, 128), jnp.float32),
            grid=(2,),
            in_specs=[pl.BlockSpec((8, 128), lambda i: (i, 0)), wspec],
            out_specs=pl.BlockSpec((8, 128), lambda i: (i, 0)),
        )
        out = f(jnp.zeros((16, 128), jnp.float32), jnp.ones((8, 128), jnp.float32))
        jax.block_until_ready(out)
        return bool(jnp.allclose(out, 1.0))
    except Exception:
        return False


@functools.partial(jax.jit, static_argnames=("d_valid", "out_dtype"))
def readout_forward(x, w1, b1, w2, b2, *, d_valid, out_dtype=jnp.float32):
    """x: (B, d_valid) f32; 128-lane-padded weights -> probs (B, d_valid).

    Jitted as one dispatch: pad -> fused MLP+softmax Pallas kernel -> slice.
    """
    B, d_in = x.shape
    Dp, Hp = w1.shape                       # both padded to multiples of 128

    # Batch tile: big enough to amortize the ~0.35 us per-grid-step overhead,
    # small enough that double-buffered blocks stay ~1 MiB of VMEM.
    TB = min(512, _round_up(B, 8))
    Bp = _round_up(B, TB)

    # Zero-pad batch rows and feature lanes inside the jit (padded rows produce
    # a uniform softmax that is sliced away; padded lanes are inert: zero w1/w2
    # columns/rows and -1e30 in the padded entries of b2).
    x_pad = jnp.zeros((Bp, Dp), jnp.float32).at[:B, :d_in].set(x)

    if _weights_can_single_buffer():
        # Constant blocks (index_map always (0,0)): no need for a second buffer.
        def w_spec(shape):
            return pl.BlockSpec(shape, lambda i: (0, 0), pipeline_mode=pl.Buffered(1))
    else:
        def w_spec(shape):
            return pl.BlockSpec(shape, lambda i: (0, 0))

    out = pl.pallas_call(
        _readout_kernel,
        out_shape=jax.ShapeDtypeStruct((Bp, Dp), out_dtype),
        grid=(Bp // TB,),
        in_specs=[
            pl.BlockSpec((TB, Dp), lambda i: (i, 0)),   # activations: tile batch
            w_spec((Dp, Hp)),                           # w1 (resident)
            w_spec((1, Hp)),                            # b1
            w_spec((Hp, Dp)),                           # w2
            w_spec((1, Dp)),                            # b2 (-1e30 on pad lanes)
        ],
        out_specs=pl.BlockSpec((TB, Dp), lambda i: (i, 0)),        # lane-dense out
        compiler_params=pltpu.CompilerParams(
            dimension_semantics=("parallel",)),   # splits across TCs when grid >= 2
    )(x_pad, w1, b1, w2, b2)

    return out[:B, :d_valid]


# Pure-JAX reference for correctness checking.
def _readout_ref(x, w1, b1, w2, b2, d_valid):
    Dp = w1.shape[0]
    xp = jnp.zeros((x.shape[0], Dp), jnp.float32).at[:, : x.shape[1]].set(x)
    h = jnp.maximum(xp @ w1 + b1, 0.0)
    logits = (h @ w2 + b2)[:, :d_valid]
    return jax.nn.softmax(logits, axis=-1)


# ----------------------------------------------------------------------------
# MCTS1 module (JAX/Pallas version)
# ----------------------------------------------------------------------------
class MCTS1Pallas:
    def __init__(self, action_dims=(3, 4, 6), hidden=32, key=None):
        self.action_dims = tuple(action_dims)
        self.d = int(np.prod(action_dims))          # in_dim == out_dim == prod(action_dims)
        self.hidden = hidden
        d, h = self.d, hidden
        Dp = _round_up(d, LANE)                     # 72  -> 128
        Hp = _round_up(h, LANE)                     # 32  -> 128 (MXU has huge slack; see review)

        if key is None:
            key = jax.random.PRNGKey(0)
        k1, k2, k3, k4 = jax.random.split(key, 4)
        # Deterministic synthetic parameters (PyTorch-Linear-style uniform scale);
        # ReadoutNetwork's body is not given in the source, reconstructed as a
        # small MLP with a softmax head over the flat action space.
        s1 = 1.0 / np.sqrt(d)
        s2 = 1.0 / np.sqrt(h)
        w1 = jax.random.uniform(k1, (d, h), jnp.float32, -s1, s1)
        b1 = jax.random.uniform(k2, (1, h), jnp.float32, -s1, s1)
        w2 = jax.random.uniform(k3, (h, d), jnp.float32, -s2, s2)
        b2 = jax.random.uniform(k4, (1, d), jnp.float32, -s2, s2)

        # Pad to lane-dense 128-wide tiles once, at init.  Zero padding keeps the
        # unpadded MLP exact (padded hidden units are ReLU(0)=0, padded w2
        # rows/cols are 0); padded OUTPUT lanes get -1e30 in b2 so the softmax
        # mask is pre-baked and the kernel needs no iota/compare/select.
        self.w1 = jnp.zeros((Dp, Hp), jnp.float32).at[:d, :h].set(w1)
        self.b1 = jnp.zeros((1, Hp), jnp.float32).at[:, :h].set(b1)
        self.w2 = jnp.zeros((Hp, Dp), jnp.float32).at[:h, :d].set(w2)
        self.b2 = jnp.full((1, Dp), -1e30, jnp.float32).at[:, :d].set(b2)

    def forward(self, root_Q, action_mask):
        # TODO(synk): the MCTS simulation loop (tree traversal / UCB selection /
        # rollout / backup over Python node objects, np.random) is host-side
        # control flow with no Pallas equivalent; only the readout hot path runs
        # on TPU.  As in the original module, action_mask is returned untouched
        # and is NOT applied to the readout logits.
        x = jnp.asarray(root_Q, jnp.float32)[None, :]            # unsqueeze(Q, 0)
        probs = readout_forward(x, self.w1, self.b1, self.w2, self.b2,
                                d_valid=self.d)
        return probs, action_mask

    def forward_batch(self, Q_batch, action_masks=None, out_dtype=jnp.float32):
        """Batched readout over many MCTS roots (amortizes dispatch/DMA).

        For large batches, pass out_dtype=jnp.bfloat16 to halve HBM write bytes
        (softmax math stays f32 inside the kernel).
        """
        x = jnp.asarray(Q_batch, jnp.float32)
        probs = readout_forward(x, self.w1, self.b1, self.w2, self.b2,
                                d_valid=self.d, out_dtype=out_dtype)
        return probs, action_masks

    __call__ = forward


# ----------------------------------------------------------------------------
if __name__ == "__main__":
    action_dims = (3, 4, 6)                      # prod = 72
    d = int(np.prod(action_dims))

    key = jax.random.PRNGKey(0)
    k_q, k_m, k_b, k_params = jax.random.split(key, 4)

    model = MCTS1Pallas(action_dims=action_dims, hidden=32, key=k_params)

    # --- single-root readout, matching MCTS1.forward semantics ---------------
    root_Q = jax.random.normal(k_q, (d,), jnp.float32)
    action_mask = (jax.random.uniform(k_m, (d,)) > 0.3).astype(jnp.float32)
    probs, mask_out = model(root_Q, action_mask)
    probs = jax.block_until_ready(probs)
    assert probs.shape == (1, d)

    # --- batched readout across many MCTS roots (TB=512 tiles, 2 grid steps) -
    B = 1000                                     # non-multiple of TB: exercises row padding
    Q_batch = jax.random.normal(k_b, (B, d), jnp.float32)
    probs_b, _ = model.forward_batch(Q_batch)
    probs_b = jax.block_until_ready(probs_b)
    assert probs_b.shape == (B, d)

    # correctness vs pure-JAX reference (tolerance dominated by f32-matmul pass
    # decomposition differences between Mosaic and XLA, not the kernel itself)
    ref_b = _readout_ref(Q_batch, model.w1, model.b1, model.w2, model.b2, d)
    assert jnp.allclose(probs_b, ref_b, rtol=5e-3, atol=5e-4)
    ref_1 = _readout_ref(root_Q[None, :], model.w1, model.b1, model.w2, model.b2, d)
    assert jnp.allclose(probs, ref_1, rtol=5e-3, atol=5e-4)
    # exact divide -> softmax rows sum to 1 within f32 rounding
    assert float(jnp.max(jnp.abs(jnp.sum(probs_b, axis=-1) - 1.0))) < 1e-3
    assert abs(float(jnp.sum(probs)) - 1.0) < 1e-3

    # --- bf16-output batched path (HBM-byte saver; math stays f32 in-kernel) -
    probs_bf16, _ = model.forward_batch(Q_batch, out_dtype=jnp.bfloat16)
    probs_bf16 = jax.block_until_ready(probs_bf16)
    assert probs_bf16.dtype == jnp.bfloat16
    probs_bf16_f32 = probs_bf16.astype(jnp.float32)
    assert jnp.allclose(probs_bf16_f32, ref_b, rtol=1e-2, atol=8e-3)
    assert float(jnp.max(jnp.abs(jnp.sum(probs_bf16_f32, axis=-1) - 1.0))) < 2e-2

    print("KERNEL_OK")
</pallas_src>

<mosaic_0001>
module attributes {stable_mosaic.version = 11 : i64} {
  func.func @_readout_kernel(%arg0: i32, %arg1: memref<8x128xf32, #tpu.memory_space<vmem>>, %arg2: memref<128x128xf32, #tpu.memory_space<vmem>>, %arg3: memref<1x128xf32, #tpu.memory_space<vmem>>, %arg4: memref<128x128xf32, #tpu.memory_space<vmem>>, %arg5: memref<1x128xf32, #tpu.memory_space<vmem>>, %arg6: memref<8x128xf32, #tpu.memory_space<vmem>>) attributes {dimension_semantics = [#tpu.dimension_semantics<parallel>], iteration_bounds = array<i64: 1>, scalar_prefetch = 0 : i64, scratch_operands = 0 : i64, tpu.core_type = #tpu.core_type<tc>, window_params = [{transform_indices = @transform_0, window_bounds = array<i64: 8, 128>}, {pipeline_mode = #tpu.pipeline_mode<synchronous>, transform_indices = @transform_1, window_bounds = array<i64: 128, 128>}, {pipeline_mode = #tpu.pipeline_mode<synchronous>, transform_indices = @transform_2, window_bounds = array<i64: 1, 128>}, {pipeline_mode = #tpu.pipeline_mode<synchronous>, transform_indices = @transform_3, window_bounds = array<i64: 128, 128>}, {pipeline_mode = #tpu.pipeline_mode<synchronous>, transform_indices = @transform_4, window_bounds = array<i64: 1, 128>}, {transform_indices = @transform_5, window_bounds = array<i64: 8, 128>}]} {
    %c0 = arith.constant 0 : index
    %c0_0 = arith.constant 0 : index
    %0 = vector.load %arg1[%c0, %c0_0] : memref<8x128xf32, #tpu.memory_space<vmem>>, vector<8x128xf32>
    %c0_1 = arith.constant 0 : index
    %c0_2 = arith.constant 0 : index
    %1 = vector.load %arg2[%c0_1, %c0_2] : memref<128x128xf32, #tpu.memory_space<vmem>>, vector<128x128xf32>
    %cst = arith.constant dense<0.000000e+00> : vector<8x128xf32>
    %2 = tpu.matmul %0, %1, %cst {dimension_numbers = #tpu.dot_dimension_numbers<[1], [0], [0], [1], [0, 0, 1, 1], [], []>} : vector<8x128xf32>, vector<128x128xf32>, vector<8x128xf32> -> vector<8x128xf32>
    %c0_3 = arith.constant 0 : index
    %c0_4 = arith.constant 0 : index
    %3 = vector.load %arg3[%c0_3, %c0_4] : memref<1x128xf32, #tpu.memory_space<vmem>>, vector<1x128xf32>
    %4 = vector.broadcast %3 : vector<1x128xf32> to vector<8x128xf32>
    %5 = arith.addf %2, %4 : vector<8x128xf32>
    %cst_5 = arith.constant 0.000000e+00 : f32
    %6 = vector.broadcast %cst_5 : f32 to vector<8x128xf32>
    %7 = arith.maximumf %5, %6 : vector<8x128xf32>
    %c0_6 = arith.constant 0 : index
    %c0_7 = arith.constant 0 : index
    %8 = vector.load %arg4[%c0_6, %c0_7] : memref<128x128xf32, #tpu.memory_space<vmem>>, vector<128x128xf32>
    %cst_8 = arith.constant dense<0.000000e+00> : vector<8x128xf32>
    %9 = tpu.matmul %7, %8, %cst_8 {dimension_numbers = #tpu.dot_dimension_numbers<[1], [0], [0], [1], [0, 0, 1, 1], [], []>} : vector<8x128xf32>, vector<128x128xf32>, vector<8x128xf32> -> vector<8x128xf32>
    %c0_9 = arith.constant 0 : index
    %c0_10 = arith.constant 0 : index
    %10 = vector.load %arg5[%c0_9, %c0_10] : memref<1x128xf32, #tpu.memory_space<vmem>>, vector<1x128xf32>
    %11 = vector.broadcast %10 : vector<1x128xf32> to vector<8x128xf32>
    %12 = arith.addf %9, %11 : vector<8x128xf32>
    %cst_11 = arith.constant dense<0xFF800000> : vector<8xf32>
    %13 = vector.multi_reduction <maximumf>, %12, %cst_11 [1] : vector<8x128xf32> to vector<8xf32>
    %14 = vector.shape_cast %13 : vector<8xf32> to vector<8x1xf32>
    %15 = vector.broadcast %14 : vector<8x1xf32> to vector<8x128xf32>
    %16 = arith.subf %12, %15 : vector<8x128xf32>
    %17 = math.exp %16 : vector<8x128xf32>
    %cst_12 = arith.constant dense<0.000000e+00> : vector<8xf32>
    %18 = vector.multi_reduction <add>, %17, %cst_12 [1] : vector<8x128xf32> to vector<8xf32>
    %19 = vector.shape_cast %18 : vector<8xf32> to vector<8x1xf32>
    %20 = vector.broadcast %19 : vector<8x1xf32> to vector<8x128xf32>
    %21 = arith.divf %17, %20 : vector<8x128xf32>
    %c0_13 = arith.constant 0 : index
    %c0_14 = arith.constant 0 : index
    %22 = vector.load %arg6[%c0_13, %c0_14] : memref<8x128xf32, #tpu.memory_space<vmem>>, vector<8x128xf32>
    tpu.vector_store %arg6[%c0_13, %c0_14], %21 {strides = array<i32>} : memref<8x128xf32, #tpu.memory_space<vmem>>, vector<8x128xf32>,
    return
  }
  func.func @transform_0(%arg0: i32) -> (i32, i32) {
    %c0_i32 = arith.constant 0 : i32
    %c0_i32_0 = arith.constant 0 : i32
    return %arg0, %c0_i32 : i32, i32
  }
  func.func @transform_1(%arg0: i32) -> (i32, i32) {
    %c0_i32 = arith.constant 0 : i32
    %c0_i32_0 = arith.constant 0 : i32
    %c0_i32_1 = arith.constant 0 : i32
    return %c0_i32, %c0_i32_0 : i32, i32
  }
  func.func @transform_2(%arg0: i32) -> (i32, i32) {
    %c0_i32 = arith.constant 0 : i32
    %c0_i32_0 = arith.constant 0 : i32
    %c0_i32_1 = arith.constant 0 : i32
    return %c0_i32, %c0_i32_0 : i32, i32
  }
  func.func @transform_3(%arg0: i32) -> (i32, i32) {
    %c0_i32 = arith.constant 0 : i32
    %c0_i32_0 = arith.constant 0 : i32
    %c0_i32_1 = arith.constant 0 : i32
    return %c0_i32, %c0_i32_0 : i32, i32
  }
  func.func @transform_4(%arg0: i32) -> (i32, i32) {
    %c0_i32 = arith.constant 0 : i32
    %c0_i32_0 = arith.constant 0 : i32
    %c0_i32_1 = arith.constant 0 : i32
    return %c0_i32, %c0_i32_0 : i32, i32
  }
  func.func @transform_5(%arg0: i32) -> (i32, i32) {
    %c0_i32 = arith.constant 0 : i32
    %c0_i32_0 = arith.constant 0 : i32
    return %arg0, %c0_i32 : i32, i32
  }
}

</mosaic_0001>

<llo_original>
// kernel: readout_forward.1
$region0: #{readout_forward.1}
  #allocation0 [shape = 'u32[]', space=smem, size = 0x4, offset = 0x4, fixed_abs, tag = 'smem constant byte address 0x4 - core index']
  #allocation1 [shape = 'u32[144,128]{1,0:T(1,128)}', space=vmem, size = 0x12000, scoped, tag = 'internal scratch']
  %s0 = inlined_call_operand.vmem [shape: f32[8,128], index: 0, kind: input, shape index: {}]
  %s1 = inlined_call_operand.hbm [shape: f32[128,128], index: 1, kind: input, shape index: {}]
  %s2 = inlined_call_operand.vmem [shape: f32[1,128], index: 2, kind: input, shape index: {}]
  %s3 = inlined_call_operand.hbm [shape: f32[128,128], index: 3, kind: input, shape index: {}]
  %s4 = inlined_call_operand.vmem [shape: f32[1,128], index: 4, kind: input, shape index: {}]
  %s5 = inlined_call_operand.vmem [shape: f32[8,128], index: 5, kind: output, shape index: {}]
  %s6 = sld [smem:[#allocation0]]
  $region38: #{readout_forward.1} parent=0
    _
  %s8 = ssub.s32 1, %s6
  %s9 = scalar_select 0, %s8, %s6
  $region1: #{readout_forward.1} parent=0
    #allocation2 [shape = 'u8[65536]{0}', space=vmem, size = 0x10000, scoped, tag = 'input window, operand 1, single buffered']
    #allocation3 [shape = 's32[1]{0}', space=sflag, size = 0x4, scoped, tag = 'scoped memory for readout_forward.1']
    #allocation4 [shape = 'u8[65536]{0}', space=vmem, size = 0x10000, scoped, tag = 'input window, operand 3, single buffered']
    #allocation5 [shape = 's32[1]{0}', space=sflag, size = 0x4, scoped, tag = 'scoped memory for readout_forward.1']
    %10 = vsyncpa [#allocation3], 0
    %11 = vsyncpa [#allocation5], 0
    // Predicated region
    $region2: #{readout_forward.1} parent=1 // pred_check
      _
    $region3: #{readout_forward.1} parent=1 // pred_check_branch
      %13 = sbr.rel (0) target = $region5
    $region4: #{readout_forward.1} parent=1 // pred_region
      _
    $region5: #{readout_forward.1} parent=1 // pred_fallthru
      _
    // Predicated region
    $region6: #{readout_forward.1} parent=1 // pred_check
      _
    $region7: #{readout_forward.1} parent=1 // pred_check_branch
      %15 = sbr.rel (0) target = $region9
    $region8: #{readout_forward.1} parent=1 // pred_region
      %s17 = ssub.s32 2048, 2048
      %18 = vsyncadd [#allocation3], %s17
      %s19 = sshll.u32 [#allocation2], 4
      %s20 = int_to_ptr.vmem [resolvable:$true] %s19
      %25 = dma.hbm_to_vmem [thread:$0]  %s1, 2048, %s20, [#allocation3], 128, 128, 8
    $region9: #{readout_forward.1} parent=1 // pred_fallthru
      _
    // Predicated region
    $region10: #{readout_forward.1} parent=1 // pred_check
      _
    $region11: #{readout_forward.1} parent=1 // pred_check_branch
      %27 = sbr.rel (0) target = $region13
    $region12: #{readout_forward.1} parent=1 // pred_region
      _
    $region13: #{readout_forward.1} parent=1 // pred_fallthru
      _
    // Predicated region
    $region14: #{readout_forward.1} parent=1 // pred_check
      _
    $region15: #{readout_forward.1} parent=1 // pred_check_branch
      %29 = sbr.rel (0) target = $region17
    $region16: #{readout_forward.1} parent=1 // pred_region
      %s31 = ssub.s32 2048, 2048
      %32 = vsyncadd [#allocation5], %s31
      %s33 = sshll.u32 [#allocation4], 4
      %s34 = int_to_ptr.vmem [resolvable:$true] %s33
      %39 = dma.hbm_to_vmem [thread:$0]  %s3, 2048, %s34, [#allocation5], 128, 128, 8
    $region17: #{readout_forward.1} parent=1 // pred_fallthru
      _
    // Predicated region
    $region18: #{readout_forward.1} parent=1 // pred_check
      _
    $region19: #{readout_forward.1} parent=1 // pred_check_branch
      %41 = sbr.rel (0) target = $region21
    $region20: #{readout_forward.1} parent=1 // pred_region
      _
    $region21: #{readout_forward.1} parent=1 // pred_fallthru
      _
    // Predicated region
    $region22: #{readout_forward.1} parent=1 // pred_check
      _
    $region23: #{readout_forward.1} parent=1 // pred_check_branch
      %43 = sbr.rel (0) target = $region25
    $region24: #{readout_forward.1} parent=1 // pred_region
      %44 = dma.done [#allocation3], 2048
    $region25: #{readout_forward.1} parent=1 // pred_fallthru
      _
    // Predicated region
    $region26: #{readout_forward.1} parent=1 // pred_check
      _
    $region27: #{readout_forward.1} parent=1 // pred_check_branch
      %46 = sbr.rel (0) target = $region29
    $region28: #{readout_forward.1} parent=1 // pred_region
      %47 = dma.done [#allocation5], 2048
    $region29: #{readout_forward.1} parent=1 // pred_fallthru
      _
    %v48 = vld [vmem:[%s0] sm:$0xff]
    %v49 = vld [vmem:[#allocation2] sm:$0xff]
    %v50 = vld [vmem:[#allocation2 + $0x8] sm:$0xff]
    %v51 = vld [vmem:[#allocation2 + $0x10] sm:$0xff]
    %v52 = vld [vmem:[#allocation2 + $0x18] sm:$0xff]
    %v53 = vld [vmem:[#allocation2 + $0x20] sm:$0xff]
    %v54 = vld [vmem:[#allocation2 + $0x28] sm:$0xff]
    %v55 = vld [vmem:[#allocation2 + $0x30] sm:$0xff]
    %v56 = vld [vmem:[#allocation2 + $0x38] sm:$0xff]
    %v57 = vld [vmem:[#allocation2 + $0x40] sm:$0xff]
    %v58 = vld [vmem:[#allocation2 + $0x48] sm:$0xff]
    %v59 = vld [vmem:[#allocation2 + $0x50] sm:$0xff]
    %v60 = vld [vmem:[#allocation2 + $0x58] sm:$0xff]
    %v61 = vld [vmem:[#allocation2 + $0x60] sm:$0xff]
    %v62 = vld [vmem:[#allocation2 + $0x68] sm:$0xff]
    %v63 = vld [vmem:[#allocation2 + $0x70] sm:$0xff]
    %v64 = vld [vmem:[#allocation2 + $0x78] sm:$0xff]
    %v65 = vld [vmem:[%s2] sm:$0x1]
    %v67 = vlaneseq
    %v68 = vshrl.u32 %v67, 7
    %v69 = vsub.s32 0, %v68
    %v70 = vrot.slane %v65, %v69
    %72 = vmatprep.subr.mxu0 0.0
    %73 = vmatpush1.msra.mxu0 %v64
    %74 = vmatprep.subr.mxu0 0.0
    %75 = vmatpush1.msra.mxu0 %v63
    %76 = vmatprep.subr.mxu0 0.0
    %77 = vmatpush1.msra.mxu0 %v62
    %78 = vmatprep.subr.mxu0 0.0
    %79 = vmatpush1.msra.mxu0 %v61
    %80 = vmatprep.subr.mxu0 0.0
    %81 = vmatpush1.msra.mxu0 %v60
    %82 = vmatprep.subr.mxu0 0.0
    %83 = vmatpush1.msra.mxu0 %v59
    %84 = vmatprep.subr.mxu0 0.0
    %85 = vmatpush1.msra.mxu0 %v58
    %86 = vmatprep.subr.mxu0 0.0
    %87 = vmatpush1.msra.mxu0 %v57
    %88 = vmatprep.subr.mxu0 0.0
    %89 = vmatpush1.msra.mxu0 %v56
    %90 = vmatprep.subr.mxu0 0.0
    %91 = vmatpush1.msra.mxu0 %v55
    %92 = vmatprep.subr.mxu0 0.0
    %93 = vmatpush1.msra.mxu0 %v54
    %94 = vmatprep.subr.mxu0 0.0
    %95 = vmatpush1.msra.mxu0 %v53
    %96 = vmatprep.subr.mxu0 0.0
    %97 = vmatpush1.msra.mxu0 %v52
    %98 = vmatprep.subr.mxu0 0.0
    %99 = vmatpush1.msra.mxu0 %v51
    %100 = vmatprep.subr.mxu0 0.0
    %101 = vmatpush1.msra.mxu0 %v50
    %102 = vmatprep.subr.mxu0 0.0
    %103 = vmatpush1.msra.mxu0 %v49
    %104 = vmatprep.subr.mxu0 0.0
    %105 = vmatpush2.msra.mxu0 0.0
    %106 = vmatprep.subr.mxu0 0.0
    %107 = vmatpush2.msra.mxu0 0.0
    %108 = vmatprep.subr.mxu0 0.0
    %109 = vmatpush2.msra.mxu0 0.0
    %110 = vmatprep.subr.mxu0 0.0
    %111 = vmatpush2.msra.mxu0 0.0
    %112 = vmatprep.subr.mxu0 0.0
    %113 = vmatpush2.msra.mxu0 0.0
    %114 = vmatprep.subr.mxu0 0.0
    %115 = vmatpush2.msra.mxu0 0.0
    %116 = vmatprep.subr.mxu0 0.0
    %117 = vmatpush2.msra.mxu0 0.0
    %118 = vmatprep.subr.mxu0 0.0
    %119 = vmatpush2.msra.mxu0 0.0
    %120 = vmatprep.subr.mxu0 0.0
    %121 = vmatpush2.msra.mxu0 0.0
    %122 = vmatprep.subr.mxu0 0.0
    %123 = vmatpush2.msra.mxu0 0.0
    %124 = vmatprep.subr.mxu0 0.0
    %125 = vmatpush2.msra.mxu0 0.0
    %126 = vmatprep.subr.mxu0 0.0
    %127 = vmatpush2.msra.mxu0 0.0
    %128 = vmatprep.subr.mxu0 0.0
    %129 = vmatpush2.msra.mxu0 0.0
    %130 = vmatprep.subr.mxu0 0.0
    %131 = vmatpush2.msra.mxu0 0.0
    %132 = vmatprep.subr.mxu0 0.0
    %133 = vmatpush2.msra.mxu0 0.0
    %134 = vmatprep.subr.mxu0 0.0
    %135 = vmatpush2.msra.mxu0 0.0
    %136 = vmatprep.mubr.f32.mxu0 0.0
    %137 = vmatmul.mubr.f32.gmra.mxu0 %v48
    %v138 = vpop.f32.mrf.mxu0
    %v139 = vadd.f32 %v70, %v138
    %v140 = vpop.f32.mrf.mxu0
    %141 = vdwg.mxu0
    %v142 = vmax.f32 %v139, 0.0
    %v143 = vld [vmem:[#allocation4] sm:$0xff]
    %v144 = vld [vmem:[#allocation4 + $0x8] sm:$0xff]
    %v145 = vld [vmem:[#allocation4 + $0x10] sm:$0xff]
    %v146 = vld [vmem:[#allocation4 + $0x18] sm:$0xff]
    %v147 = vld [vmem:[#allocation4 + $0x20] sm:$0xff]
    %v148 = vld [vmem:[#allocation4 + $0x28] sm:$0xff]
    %v149 = vld [vmem:[#allocation4 + $0x30] sm:$0xff]
    %v150 = vld [vmem:[#allocation4 + $0x38] sm:$0xff]
    %v151 = vld [vmem:[#allocation4 + $0x40] sm:$0xff]
    %v152 = vld [vmem:[#allocation4 + $0x48] sm:$0xff]
    %v153 = vld [vmem:[#allocation4 + $0x50] sm:$0xff]
    %v154 = vld [vmem:[#allocation4 + $0x58] sm:$0xff]
    %v155 = vld [vmem:[#allocation4 + $0x60] sm:$0xff]
    %v156 = vld [vmem:[#allocation4 + $0x68] sm:$0xff]
    %v157 = vld [vmem:[#allocation4 + $0x70] sm:$0xff]
    %v158 = vld [vmem:[#allocation4 + $0x78] sm:$0xff]
    %v159 = vld [vmem:[%s4] sm:$0x1]
    %v161 = vlaneseq
    %v162 = vshrl.u32 %v161, 7
    %v163 = vsub.s32 0, %v162
    %v164 = vrot.slane %v159, %v163
    %166 = vmatprep.subr.mxu0 0.0
    %167 = vmatpush1.msra.mxu0 %v158
    %168 = vmatprep.subr.mxu0 0.0
    %169 = vmatpush1.msra.mxu0 %v157
    %170 = vmatprep.subr.mxu0 0.0
    %171 = vmatpush1.msra.mxu0 %v156
    %172 = vmatprep.subr.mxu0 0.0
    %173 = vmatpush1.msra.mxu0 %v155
    %174 = vmatprep.subr.mxu0 0.0
    %175 = vmatpush1.msra.mxu0 %v154
    %176 = vmatprep.subr.mxu0 0.0
    %177 = vmatpush1.msra.mxu0 %v153
    %178 = vmatprep.subr.mxu0 0.0
    %179 = vmatpush1.msra.mxu0 %v152
    %180 = vmatprep.subr.mxu0 0.0
    %181 = vmatpush1.msra.mxu0 %v151
    %182 = vmatprep.subr.mxu0 0.0
    %183 = vmatpush1.msra.mxu0 %v150
    %184 = vmatprep.subr.mxu0 0.0
    %185 = vmatpush1.msra.mxu0 %v149
    %186 = vmatprep.subr.mxu0 0.0
    %187 = vmatpush1.msra.mxu0 %v148
    %188 = vmatprep.subr.mxu0 0.0
    %189 = vmatpush1.msra.mxu0 %v147
    %190 = vmatprep.subr.mxu0 0.0
    %191 = vmatpush1.msra.mxu0 %v146
    %192 = vmatprep.subr.mxu0 0.0
    %193 = vmatpush1.msra.mxu0 %v145
    %194 = vmatprep.subr.mxu0 0.0
    %195 = vmatpush1.msra.mxu0 %v144
    %196 = vmatprep.subr.mxu0 0.0
    %197 = vmatpush1.msra.mxu0 %v143
    %198 = vmatprep.subr.mxu0 0.0
    %199 = vmatpush2.msra.mxu0 0.0
    %200 = vmatprep.subr.mxu0 0.0
    %201 = vmatpush2.msra.mxu0 0.0
    %202 = vmatprep.subr.mxu0 0.0
    %203 = vmatpush2.msra.mxu0 0.0
    %204 = vmatprep.subr.mxu0 0.0
    %205 = vmatpush2.msra.mxu0 0.0
    %206 = vmatprep.subr.mxu0 0.0
    %207 = vmatpush2.msra.mxu0 0.0
    %208 = vmatprep.subr.mxu0 0.0
    %209 = vmatpush2.msra.mxu0 0.0
    %210 = vmatprep.subr.mxu0 0.0
    %211 = vmatpush2.msra.mxu0 0.0
    %212 = vmatprep.subr.mxu0 0.0
    %213 = vmatpush2.msra.mxu0 0.0
    %214 = vmatprep.subr.mxu0 0.0
    %215 = vmatpush2.msra.mxu0 0.0
    %216 = vmatprep.subr.mxu0 0.0
    %217 = vmatpush2.msra.mxu0 0.0
    %218 = vmatprep.subr.mxu0 0.0
    %219 = vmatpush2.msra.mxu0 0.0
    %220 = vmatprep.subr.mxu0 0.0
    %221 = vmatpush2.msra.mxu0 0.0
    %222 = vmatprep.subr.mxu0 0.0
    %223 = vmatpush2.msra.mxu0 0.0
    %224 = vmatprep.subr.mxu0 0.0
    %225 = vmatpush2.msra.mxu0 0.0
    %226 = vmatprep.subr.mxu0 0.0
    %227 = vmatpush2.msra.mxu0 0.0
    %228 = vmatprep.subr.mxu0 0.0
    %229 = vmatpush2.msra.mxu0 0.0
    %230 = vmatprep.mubr.f32.mxu0 0.0
    %231 = vmatmul.mubr.f32.gmra.mxu0 %v142
    %v232 = vpop.f32.mrf.mxu0
    %v233 = vadd.f32 %v164, %v232
    %v234 = vpop.f32.mrf.mxu0
    %235 = vdwg.mxu0
    %236 = vmax.xlane.f32.xlu0 %v233
    %v237 = vpop.xlane.xlu0 %236
    %v238 = vsub.f32 %v233, %v237
    %v239 = vmul.f32 %v238, 1.442695
    %v240 = vpow.pop %v239
    %241 = vadd.xlane.f32.xlu0 %v240
    %v242 = vpop.xlane.xlu0 %241
    %v243 = vrcp.pop %v242
    %v244 = vmul.f32 %v240, %v243
    %245 = vst [vmem:[%s5] sm:$0xff] %v244
    // Predicated region
    $region30: #{readout_forward.1} parent=1 // pred_check
      _
    $region31: #{readout_forward.1} parent=1 // pred_check_branch
      %247 = sbr.rel (0) target = $region33
    $region32: #{readout_forward.1} parent=1 // pred_region
      _
    $region33: #{readout_forward.1} parent=1 // pred_fallthru
      _
    // Predicated region
    $region34: #{readout_forward.1} parent=1 // pred_check
      _
    $region35: #{readout_forward.1} parent=1 // pred_check_branch
      %249 = sbr.rel (0) target = $region37
    $region36: #{readout_forward.1} parent=1 // pred_region
      _
    $region37: #{readout_forward.1} parent=1 // pred_fallthru
      _
    %250 = vsyncpa [#allocation3], 1
    %251 = vsyncpa [#allocation5], 1

</llo_original>
